<compile_context>
chip_gen: v5e
topology: v5e:2x2
jax: 0.10.0
libtpu: 0.0.40
codegen_flags: <defaults>
</compile_context>

<pallas_src>
import functools

import jax
import jax.numpy as jnp
from jax.experimental import pallas as pl
from jax.experimental.pallas import tpu as pltpu

_EPS = 1e-8
_LANES = 128          # lanes per vreg row
_ACC_ROWS = 32        # accumulator sublanes (4 f32 vregs -> more VALU ILP)
_VMEM_LIMIT_BYTES = 32 * 1024 * 1024


def _pick_block_rows():
    """Rows per streaming block, chosen per TPU generation."""
    try:
        vmem = getattr(pltpu.get_tpu_info(), "vmem_capacity_bytes", None)
    except Exception:  # interpret mode / unexpected backends
        vmem = None
    # v7x: 64 MiB VMEM/TC but 3.2 TB/s HBM -> larger blocks to amortize the
    # ~0.35us per-grid-step overhead.  v5e/v6e already sit near roofline at 2 MiB.
    if vmem is not None and vmem <= (64 << 20):
        return 8192   # 4 MiB per input per step (2 inputs x 2 bufs = 16 MiB)
    return 4096       # 2 MiB per input per step (8 MiB; inside v5e's 16 MiB)


def _loss_kernel(pred_ref, targ_ref, sq_out, rel_out, sq_acc, rel_acc, *,
                 total_rows, block_rows, steps_per_core, needs_mask):
    s = pl.program_id(1)

    @pl.when(s == 0)
    def _():
        sq_acc[...] = jnp.zeros_like(sq_acc)
        rel_acc[...] = jnp.zeros_like(rel_acc)

    # Cast inside the kernel (free on the VPU): supports bf16 inputs without
    # materializing an f32 copy in HBM.
    p = pred_ref[...].astype(jnp.float32)
    t = targ_ref[...].astype(jnp.float32)

    d = p - t
    sq = d * d
    # Exact reciprocal keeps parity with the f32-divide reference.
    # TODO(synk): approx=True (EUP vrcp) frees a few VALU ops/elem on v7x at the
    # cost of ~1e-5-level deviation from the reference loss.
    rel = jnp.abs(d * pl.reciprocal(t + _EPS, approx=False))

    groups = block_rows // _ACC_ROWS

    def _accum(sq_v, rel_v):
        sq_acc[...] += jnp.sum(sq_v.reshape(groups, _ACC_ROWS, _LANES), axis=0)
        rel_acc[...] += jnp.sum(rel_v.reshape(groups, _ACC_ROWS, _LANES), axis=0)

    if needs_mask:
        # Only emitted when the row-blocks don't exactly cover the array; the
        # masked path runs for at most one block per core.
        c = pl.program_id(0)
        block_start = (c * steps_per_core + s) * block_rows
        is_full = block_start + block_rows <= total_rows

        @pl.when(is_full)
        def _():
            _accum(sq, rel)

        @pl.when(jnp.logical_not(is_full))
        def _():
            # Row-granular mask (the sub-128 lane tail is zero-padded in the
            # wrapper, contributing 0 to both terms).  Keep it a select: OOB
            # rows may hold garbage that produced Inf/NaN in `rel`.
            rows = jax.lax.broadcasted_iota(jnp.int32, (block_rows, _LANES), 0)
            valid = rows < (total_rows - block_start)
            _accum(jnp.where(valid, sq, 0.0), jnp.where(valid, rel, 0.0))
    else:
        _accum(sq, rel)

    @pl.when(s == pl.num_programs(1) - 1)
    def _():
        sq_out[...] = sq_acc[...]
        rel_out[...] = rel_acc[...]


def custom_loss(pred, target, alpha=0.8):
    """alpha * MSE(pred, target) + (1-alpha) * mean(|(pred-target)/(target+1e-8)|)."""
    assert pred.shape == target.shape
    n = pred.size

    # Flatten (contiguous reshape: no HBM copy).  No dtype cast here.
    flat_p = pred.reshape(-1)
    flat_t = target.reshape(-1)

    # View as lane-dense (rows, 128).  Pad only the (rare) sub-128 tail with
    # zeros; zeros contribute exactly 0 to both loss terms.
    n_lane = pl.cdiv(n, _LANES) * _LANES
    if n_lane != n:
        flat_p = jnp.pad(flat_p, (0, n_lane - n))
        flat_t = jnp.pad(flat_t, (0, n_lane - n))
    p2 = flat_p.reshape(-1, _LANES)
    t2 = flat_t.reshape(-1, _LANES)
    total_rows = p2.shape[0]

    # Streaming block of rows: per-generation size, multiple of _ACC_ROWS.
    cap = pl.cdiv(total_rows, _ACC_ROWS) * _ACC_ROWS
    block_rows = min(_pick_block_rows(), cap)
    n_blocks = pl.cdiv(total_rows, block_rows)

    # Split the row-block axis across 2 TensorCores ("parallel" leading axis):
    # ~2x on v7x, harmless serialization on single-core v5e/v6e.
    num_splits = 2 if n_blocks >= 2 else 1
    steps_per_core = pl.cdiv(n_blocks, num_splits)
    needs_mask = num_splits * steps_per_core * block_rows > total_rows

    kernel = functools.partial(
        _loss_kernel,
        total_rows=total_rows,
        block_rows=block_rows,
        steps_per_core=steps_per_core,
        needs_mask=needs_mask,
    )

    def in_map(c, s):
        # Clamp so a (fully masked) trailing logical block never DMAs OOB.
        return (jnp.minimum(c * steps_per_core + s, n_blocks - 1), 0)

    out_spec = pl.BlockSpec((None, _ACC_ROWS, _LANES), lambda c, s: (c, 0, 0))

    sq_part, rel_part = pl.pallas_call(
        kernel,
        out_shape=(
            jax.ShapeDtypeStruct((num_splits, _ACC_ROWS, _LANES), jnp.float32),
            jax.ShapeDtypeStruct((num_splits, _ACC_ROWS, _LANES), jnp.float32),
        ),
        grid_spec=pltpu.PrefetchScalarGridSpec(
            num_scalar_prefetch=0,
            grid=(num_splits, steps_per_core),
            in_specs=[
                pl.BlockSpec((block_rows, _LANES), in_map),
                pl.BlockSpec((block_rows, _LANES), in_map),
            ],
            out_specs=[out_spec, out_spec],
            scratch_shapes=[
                pltpu.VMEM((_ACC_ROWS, _LANES), jnp.float32),
                pltpu.VMEM((_ACC_ROWS, _LANES), jnp.float32),
            ],
        ),
        compiler_params=pltpu.CompilerParams(
            dimension_semantics=("parallel", "arbitrary"),
            vmem_limit_bytes=_VMEM_LIMIT_BYTES,
        ),
        # TODO(synk): if xprof still shows exposed DMA on v7x after the core
        # split, try pipeline_mode=pl.Buffered(3) on the two input BlockSpecs.
    )(p2, t2)

    # Final mean + alpha combine in JAX: keeps alpha / n out of the kernel, so
    # different alpha values never trigger a recompile.
    inv_n = 1.0 / float(n)
    mse = jnp.sum(sq_part) * inv_n
    rel = jnp.sum(rel_part) * inv_n
    return alpha * mse + (1.0 - alpha) * rel


def _reference_loss(pred, target, alpha=0.8):
    pred = pred.astype(jnp.float32)
    target = target.astype(jnp.float32)
    mse = jnp.mean((pred - target) ** 2)
    rel = jnp.mean(jnp.abs((pred - target) / (target + _EPS)))
    return alpha * mse + (1.0 - alpha) * rel


if __name__ == "__main__":
    key = jax.random.PRNGKey(0)
    k1, k2 = jax.random.split(key)
    # small NCHW-like shapes consistent with a conv-net regression head
    pred = jax.random.normal(k1, (2, 4, 16, 16), dtype=jnp.float32)
    target = pred + 0.1 * jax.random.normal(k2, (2, 4, 16, 16), dtype=jnp.float32)

    loss = custom_loss(pred, target, alpha=0.8)
    jax.block_until_ready(loss)

    ref = _reference_loss(pred, target, alpha=0.8)
    assert jnp.allclose(loss, ref, rtol=1e-5, atol=1e-6), (loss, ref)

    print("KERNEL_OK")
</pallas_src>

<mosaic_0001>
module attributes {stable_mosaic.version = 11 : i64} {
  func.func @_loss_kernel(%arg0: i32, %arg1: i32, %arg2: memref<32x128xf32, #tpu.memory_space<vmem>>, %arg3: memref<32x128xf32, #tpu.memory_space<vmem>>, %arg4: memref<1x32x128xf32, #tpu.memory_space<vmem>>, %arg5: memref<1x32x128xf32, #tpu.memory_space<vmem>>, %arg6: memref<32x128xf32, #tpu.memory_space<vmem>>, %arg7: memref<32x128xf32, #tpu.memory_space<vmem>>) attributes {dimension_semantics = [#tpu.dimension_semantics<parallel>, #tpu.dimension_semantics<arbitrary>], iteration_bounds = array<i64: 1, 1>, scalar_prefetch = 0 : i64, scratch_operands = 2 : i64, tpu.core_type = #tpu.core_type<tc>, window_params = [{transform_indices = @transform_0, window_bounds = array<i64: 32, 128>}, {transform_indices = @transform_1, window_bounds = array<i64: 32, 128>}, {transform_indices = @transform_2, window_bounds = array<i64: 1, 32, 128>}, {transform_indices = @transform_3, window_bounds = array<i64: 1, 32, 128>}]} {
    %c0_i32 = arith.constant 0 : i32
    %0 = arith.cmpi eq, %arg1, %c0_i32 : i32
    %1 = arith.extui %0 : i1 to i32
    %c0_i32_0 = arith.constant 0 : i32
    %2 = arith.cmpi ne, %1, %c0_i32_0 : i32
    scf.if %2 {
      %cst_9 = arith.constant 0.000000e+00 : f32
      %25 = vector.broadcast %cst_9 : f32 to vector<32x128xf32>
      %c0_10 = arith.constant 0 : index
      %c0_11 = arith.constant 0 : index
      %26 = vector.load %arg6[%c0_10, %c0_11] : memref<32x128xf32, #tpu.memory_space<vmem>>, vector<32x128xf32>
      tpu.vector_store %arg6[%c0_10, %c0_11], %25 {strides = array<i32>} : memref<32x128xf32, #tpu.memory_space<vmem>>, vector<32x128xf32>,
      %cst_12 = arith.constant 0.000000e+00 : f32
      %27 = vector.broadcast %cst_12 : f32 to vector<32x128xf32>
      %c0_13 = arith.constant 0 : index
      %c0_14 = arith.constant 0 : index
      %28 = vector.load %arg7[%c0_13, %c0_14] : memref<32x128xf32, #tpu.memory_space<vmem>>, vector<32x128xf32>
      tpu.vector_store %arg7[%c0_13, %c0_14], %27 {strides = array<i32>} : memref<32x128xf32, #tpu.memory_space<vmem>>, vector<32x128xf32>,
    } else {
    }
    %c0 = arith.constant 0 : index
    %c0_1 = arith.constant 0 : index
    %3 = vector.load %arg2[%c0, %c0_1] : memref<32x128xf32, #tpu.memory_space<vmem>>, vector<32x128xf32>
    %c0_2 = arith.constant 0 : index
    %c0_3 = arith.constant 0 : index
    %4 = vector.load %arg3[%c0_2, %c0_3] : memref<32x128xf32, #tpu.memory_space<vmem>>, vector<32x128xf32>
    %5 = arith.subf %3, %4 : vector<32x128xf32>
    %6 = arith.mulf %5, %5 : vector<32x128xf32>
    %cst = arith.constant 9.99999993E-9 : f32
    %7 = vector.broadcast %cst : f32 to vector<32x128xf32>
    %8 = arith.addf %4, %7 : vector<32x128xf32>
    %9 = tpu.reciprocal %8 : vector<32x128xf32> -> vector<32x128xf32>
    %10 = arith.mulf %5, %9 : vector<32x128xf32>
    %11 = math.absf %10 : vector<32x128xf32>
    %c1_i32 = arith.constant 1 : i32
    %12 = arith.muli %arg0, %c1_i32 : i32
    %13 = arith.addi %12, %arg1 : i32
    %c32_i32 = arith.constant 32 : i32
    %14 = arith.muli %13, %c32_i32 : i32
    %c32_i32_4 = arith.constant 32 : i32
    %15 = arith.addi %14, %c32_i32_4 : i32
    %c16_i32 = arith.constant 16 : i32
    %16 = arith.cmpi sle, %15, %c16_i32 : i32
    %17 = arith.extui %16 : i1 to i32
    %c0_i32_5 = arith.constant 0 : i32
    %18 = arith.cmpi ne, %17, %c0_i32_5 : i32
    scf.if %18 {
      %c0_9 = arith.constant 0 : index
      %c0_10 = arith.constant 0 : index
      %25 = vector.load %arg6[%c0_9, %c0_10] : memref<32x128xf32, #tpu.memory_space<vmem>>, vector<32x128xf32>
      %26 = vector.shape_cast %6 : vector<32x128xf32> to vector<1x32x128xf32>
      %cst_11 = arith.constant dense<0.000000e+00> : vector<32x128xf32>
      %27 = vector.multi_reduction <add>, %26, %cst_11 [0] : vector<1x32x128xf32> to vector<32x128xf32>
      %28 = arith.addf %25, %27 : vector<32x128xf32>
      %c0_12 = arith.constant 0 : index
      %c0_13 = arith.constant 0 : index
      %29 = vector.load %arg6[%c0_12, %c0_13] : memref<32x128xf32, #tpu.memory_space<vmem>>, vector<32x128xf32>
      tpu.vector_store %arg6[%c0_12, %c0_13], %28 {strides = array<i32>} : memref<32x128xf32, #tpu.memory_space<vmem>>, vector<32x128xf32>,
      %c0_14 = arith.constant 0 : index
      %c0_15 = arith.constant 0 : index
      %30 = vector.load %arg7[%c0_14, %c0_15] : memref<32x128xf32, #tpu.memory_space<vmem>>, vector<32x128xf32>
      %31 = vector.shape_cast %11 : vector<32x128xf32> to vector<1x32x128xf32>
      %cst_16 = arith.constant dense<0.000000e+00> : vector<32x128xf32>
      %32 = vector.multi_reduction <add>, %31, %cst_16 [0] : vector<1x32x128xf32> to vector<32x128xf32>
      %33 = arith.addf %30, %32 : vector<32x128xf32>
      %c0_17 = arith.constant 0 : index
      %c0_18 = arith.constant 0 : index
      %34 = vector.load %arg7[%c0_17, %c0_18] : memref<32x128xf32, #tpu.memory_space<vmem>>, vector<32x128xf32>
      tpu.vector_store %arg7[%c0_17, %c0_18], %33 {strides = array<i32>} : memref<32x128xf32, #tpu.memory_space<vmem>>, vector<32x128xf32>,
    } else {
    }
    %true = arith.constant true
    %19 = arith.xori %16, %true : i1
    %20 = arith.extui %19 : i1 to i32
    %c0_i32_6 = arith.constant 0 : i32
    %21 = arith.cmpi ne, %20, %c0_i32_6 : i32
    scf.if %21 {
      %25 = tpu.iota {dimensions = array<i32: 0>} : vector<32x128xi32>
      %c16_i32_9 = arith.constant 16 : i32
      %26 = arith.subi %c16_i32_9, %14 : i32
      %27 = vector.broadcast %26 : i32 to vector<32x128xi32>
      %28 = arith.cmpi slt, %25, %27 : vector<32x128xi32>
      %cst_10 = arith.constant 0.000000e+00 : f32
      %29 = vector.broadcast %cst_10 : f32 to vector<32x128xf32>
      %30 = arith.select %28, %6, %29 : vector<32x128xi1>, vector<32x128xf32>
      %cst_11 = arith.constant 0.000000e+00 : f32
      %31 = vector.broadcast %cst_11 : f32 to vector<32x128xf32>
      %32 = arith.select %28, %11, %31 : vector<32x128xi1>, vector<32x128xf32>
      %c0_12 = arith.constant 0 : index
      %c0_13 = arith.constant 0 : index
      %33 = vector.load %arg6[%c0_12, %c0_13] : memref<32x128xf32, #tpu.memory_space<vmem>>, vector<32x128xf32>
      %34 = vector.shape_cast %30 : vector<32x128xf32> to vector<1x32x128xf32>
      %cst_14 = arith.constant dense<0.000000e+00> : vector<32x128xf32>
      %35 = vector.multi_reduction <add>, %34, %cst_14 [0] : vector<1x32x128xf32> to vector<32x128xf32>
      %36 = arith.addf %33, %35 : vector<32x128xf32>
      %c0_15 = arith.constant 0 : index
      %c0_16 = arith.constant 0 : index
      %37 = vector.load %arg6[%c0_15, %c0_16] : memref<32x128xf32, #tpu.memory_space<vmem>>, vector<32x128xf32>
      tpu.vector_store %arg6[%c0_15, %c0_16], %36 {strides = array<i32>} : memref<32x128xf32, #tpu.memory_space<vmem>>, vector<32x128xf32>,
      %c0_17 = arith.constant 0 : index
      %c0_18 = arith.constant 0 : index
      %38 = vector.load %arg7[%c0_17, %c0_18] : memref<32x128xf32, #tpu.memory_space<vmem>>, vector<32x128xf32>
      %39 = vector.shape_cast %32 : vector<32x128xf32> to vector<1x32x128xf32>
      %cst_19 = arith.constant dense<0.000000e+00> : vector<32x128xf32>
      %40 = vector.multi_reduction <add>, %39, %cst_19 [0] : vector<1x32x128xf32> to vector<32x128xf32>
      %41 = arith.addf %38, %40 : vector<32x128xf32>
      %c0_20 = arith.constant 0 : index
      %c0_21 = arith.constant 0 : index
      %42 = vector.load %arg7[%c0_20, %c0_21] : memref<32x128xf32, #tpu.memory_space<vmem>>, vector<32x128xf32>
      tpu.vector_store %arg7[%c0_20, %c0_21], %41 {strides = array<i32>} : memref<32x128xf32, #tpu.memory_space<vmem>>, vector<32x128xf32>,
    } else {
    }
    %c0_i32_7 = arith.constant 0 : i32
    %22 = arith.cmpi eq, %arg1, %c0_i32_7 : i32
    %23 = arith.extui %22 : i1 to i32
    %c0_i32_8 = arith.constant 0 : i32
    %24 = arith.cmpi ne, %23, %c0_i32_8 : i32
    scf.if %24 {
      %c0_9 = arith.constant 0 : index
      %c0_10 = arith.constant 0 : index
      %25 = vector.load %arg6[%c0_9, %c0_10] : memref<32x128xf32, #tpu.memory_space<vmem>>, vector<32x128xf32>
      %c0_11 = arith.constant 0 : index
      %c0_12 = arith.constant 0 : index
      %c0_13 = arith.constant 0 : index
      %26 = vector.load %arg4[%c0_11, %c0_12, %c0_13] : memref<1x32x128xf32, #tpu.memory_space<vmem>>, vector<1x32x128xf32>
      %27 = vector.shape_cast %26 : vector<1x32x128xf32> to vector<32x128xf32>
      %28 = vector.shape_cast %25 : vector<32x128xf32> to vector<1x32x128xf32>
      tpu.vector_store %arg4[%c0_11, %c0_12, %c0_13], %28 {strides = array<i32>} : memref<1x32x128xf32, #tpu.memory_space<vmem>>, vector<1x32x128xf32>,
      %c0_14 = arith.constant 0 : index
      %c0_15 = arith.constant 0 : index
      %29 = vector.load %arg7[%c0_14, %c0_15] : memref<32x128xf32, #tpu.memory_space<vmem>>, vector<32x128xf32>
      %c0_16 = arith.constant 0 : index
      %c0_17 = arith.constant 0 : index
      %c0_18 = arith.constant 0 : index
      %30 = vector.load %arg5[%c0_16, %c0_17, %c0_18] : memref<1x32x128xf32, #tpu.memory_space<vmem>>, vector<1x32x128xf32>
      %31 = vector.shape_cast %30 : vector<1x32x128xf32> to vector<32x128xf32>
      %32 = vector.shape_cast %29 : vector<32x128xf32> to vector<1x32x128xf32>
      tpu.vector_store %arg5[%c0_16, %c0_17, %c0_18], %32 {strides = array<i32>} : memref<1x32x128xf32, #tpu.memory_space<vmem>>, vector<1x32x128xf32>,
    } else {
    }
    return
  }
  func.func @transform_0(%arg0: i32, %arg1: i32) -> (i32, i32) {
    %c1_i32 = arith.constant 1 : i32
    %0 = arith.muli %arg0, %c1_i32 : i32
    %1 = arith.addi %0, %arg1 : i32
    %c0_i32 = arith.constant 0 : i32
    %2 = arith.minsi %1, %c0_i32 : i32
    %c0_i32_0 = arith.constant 0 : i32
    %c0_i32_1 = arith.constant 0 : i32
    return %2, %c0_i32_0 : i32, i32
  }
  func.func @transform_1(%arg0: i32, %arg1: i32) -> (i32, i32) {
    %c1_i32 = arith.constant 1 : i32
    %0 = arith.muli %arg0, %c1_i32 : i32
    %1 = arith.addi %0, %arg1 : i32
    %c0_i32 = arith.constant 0 : i32
    %2 = arith.minsi %1, %c0_i32 : i32
    %c0_i32_0 = arith.constant 0 : i32
    %c0_i32_1 = arith.constant 0 : i32
    return %2, %c0_i32_0 : i32, i32
  }
  func.func @transform_2(%arg0: i32, %arg1: i32) -> (i32, i32, i32) {
    %c0_i32 = arith.constant 0 : i32
    %c0_i32_0 = arith.constant 0 : i32
    %c0_i32_1 = arith.constant 0 : i32
    return %arg0, %c0_i32, %c0_i32_0 : i32, i32, i32
  }
  func.func @transform_3(%arg0: i32, %arg1: i32) -> (i32, i32, i32) {
    %c0_i32 = arith.constant 0 : i32
    %c0_i32_0 = arith.constant 0 : i32
    %c0_i32_1 = arith.constant 0 : i32
    return %arg0, %c0_i32, %c0_i32_0 : i32, i32, i32
  }
}

</mosaic_0001>

<llo_original>
// kernel: tpu_custom_call.1
$region0: #{tpu_custom_call.1}
  #allocation0 [shape = 'u32[]', space=smem, size = 0x4, offset = 0x4, fixed_abs, tag = 'smem constant byte address 0x4 - core index']
  #allocation1 [shape = 'u32[72,128]{1,0:T(1,128)}', space=vmem, size = 0x9000, scoped, tag = 'internal scratch']
  #allocation2 [shape = 'f32[32,128]{1,0:T(8,128)}', space=vmem, size = 0x4000, scoped, tag = 'scratch operand']
  #allocation3 [shape = 'f32[32,128]{1,0:T(8,128)}', space=vmem, size = 0x4000, scoped, tag = 'scratch operand']
  %s0 = inlined_call_operand.hbm [shape: f32[16,128], index: 0, kind: input, shape index: {}]
  %s1 = inlined_call_operand.hbm [shape: f32[16,128], index: 1, kind: input, shape index: {}]
  %s2 = inlined_call_operand.hbm [shape: f32[1,32,128], index: 2, kind: output, shape index: {0}]
  %s3 = inlined_call_operand.hbm [shape: f32[1,32,128], index: 3, kind: output, shape index: {1}]
  %4 = xla_tuple %s2, %s3
  %s5 = sld [smem:[#allocation0]]
  $region50: #{tpu_custom_call.1} parent=0
    _
  %s7 = ssub.s32 1, %s5
  %s8 = scalar_select 0, %s7, %s5
  $region1: #{tpu_custom_call.1} parent=0
    #allocation4 [shape = 'u8[16384]{0}', space=vmem, size = 0x4000, scoped, tag = 'input window, operand 0, single buffered']
    #allocation5 [shape = 's32[1]{0}', space=sflag, size = 0x4, scoped, tag = 'scoped memory for tpu_custom_call.1']
    #allocation6 [shape = 's32[1]{0}', space=sflag, size = 0x4, scoped, tag = 'scoped memory for tpu_custom_call.1']
    #allocation7 [shape = 'u8[16384]{0}', space=vmem, size = 0x4000, scoped, tag = 'input window, operand 1, single buffered']
    #allocation8 [shape = 's32[1]{0}', space=sflag, size = 0x4, scoped, tag = 'scoped memory for tpu_custom_call.1']
    #allocation9 [shape = 'u8[16384]{0}', space=vmem, size = 0x4000, scoped, tag = 'output window, operand 0, single buffered']
    #allocation10 [shape = 'u8[16384]{0}', space=vmem, size = 0x4000, scoped, tag = 'output window, operand 1, single buffered']
    #allocation11 [shape = 's32[1]{0}', space=sflag, size = 0x4, scoped, tag = 'scoped memory for tpu_custom_call.1']
    %9 = vsyncpa [#allocation5], 0
    %10 = vsyncpa [#allocation8], 0
    %11 = vsyncpa [#allocation6], 0
    %12 = vsyncpa [#allocation11], 0
    // Predicated region
    $region2: #{tpu_custom_call.1} parent=1 // pred_check
      _
    $region3: #{tpu_custom_call.1} parent=1 // pred_check_branch
      %14 = sbr.rel (0) target = $region5
    $region4: #{tpu_custom_call.1} parent=1 // pred_region
      %s15 = sadd.s32 0, 0
      %p16 = scmp.lt.s32.totalorder %s15, 0
      %s17 = scalar_select %p16, %s15, 0
      %s18 = smul.u32 4, %s17
      %s19 = ssub.s32 2, %s18
      %s20 = smul.u32 8, %s19
      %s21 = ssub.s32 32, %s20
      %s22 = sshll.u32 %s21, 4
      %23 = vsyncadd [#allocation5], %s22
      %p24 = scmp.ne.s32.totalorder 0, %s20
      %s25 = smul.addr %s18, 8
      %s26 = scalar_lea.hbm %s0, %s25
      %s27 = smul.u32 8, %s19
      %s28 = sshll.u32 %s26, 4
      %s29 = int_to_ptr.hbm [resolvable:$true] %s28
      %s30 = sshll.u32 [#allocation4], 4
      %s31 = int_to_ptr.vmem [resolvable:$true] %s30
      %s32 = sshll.u32 %s27, 4
      %36 = dma.hbm_to_vmem [thread:$0]  (%p24), %s29, %s32, %s31, [#allocation5], 128, 128, 8
    $region5: #{tpu_custom_call.1} parent=1 // pred_fallthru
      _
    // Predicated region
    $region6: #{tpu_custom_call.1} parent=1 // pred_check
      _
    $region7: #{tpu_custom_call.1} parent=1 // pred_check_branch
      %38 = sbr.rel (0) target = $region9
    $region8: #{tpu_custom_call.1} parent=1 // pred_region
      %s39 = sadd.s32 0, 0
      %p40 = scmp.lt.s32.totalorder %s39, 0
      %s41 = scalar_select %p40, %s39, 0
      %s42 = smul.u32 4, %s41
      %s43 = ssub.s32 2, %s42
      %s44 = smul.u32 8, %s43
      %s45 = ssub.s32 32, %s44
      %s46 = sshll.u32 %s45, 4
      %47 = vsyncadd [#allocation8], %s46
      %p48 = scmp.ne.s32.totalorder 0, %s44
      %s49 = smul.addr %s42, 8
      %s50 = scalar_lea.hbm %s1, %s49
      %s51 = smul.u32 8, %s43
      %s52 = sshll.u32 %s50, 4
      %s53 = int_to_ptr.hbm [resolvable:$true] %s52
      %s54 = sshll.u32 [#allocation7], 4
      %s55 = int_to_ptr.vmem [resolvable:$true] %s54
      %s56 = sshll.u32 %s51, 4
      %60 = dma.hbm_to_vmem [thread:$0]  (%p48), %s53, %s56, %s55, [#allocation8], 128, 128, 8
    $region9: #{tpu_custom_call.1} parent=1 // pred_fallthru
      _
    // Predicated region
    $region10: #{tpu_custom_call.1} parent=1 // pred_check
      _
    $region11: #{tpu_custom_call.1} parent=1 // pred_check_branch
      %62 = sbr.rel (0) target = $region13
    $region12: #{tpu_custom_call.1} parent=1 // pred_region
      %64 = dma.done [#allocation5], 512
    $region13: #{tpu_custom_call.1} parent=1 // pred_fallthru
      _
    // Predicated region
    $region14: #{tpu_custom_call.1} parent=1 // pred_check
      _
    $region15: #{tpu_custom_call.1} parent=1 // pred_check_branch
      %66 = sbr.rel (0) target = $region17
    $region16: #{tpu_custom_call.1} parent=1 // pred_region
      %68 = dma.done [#allocation8], 512
    $region17: #{tpu_custom_call.1} parent=1 // pred_fallthru
      _
    %s69 = sadd.s32 0, 0
    %p70 = scmp.lt.s32.totalorder %s69, 0
    %s71 = scalar_select %p70, %s69, 0
    %s72 = smul.u32 4, %s71
    %s73 = ssub.s32 2, %s72
    %s74 = smul.u32 8, %s73
    %s75 = sadd.s32 0, 0
    %p76 = scmp.lt.s32.totalorder %s75, 0
    %s77 = scalar_select %p76, %s75, 0
    %s78 = smul.u32 4, %s77
    %s79 = ssub.s32 2, %s78
    %s80 = smul.u32 8, %s79
    %p81 = scmp.eq.s32.totalorder 0, 0
    // Predicated region
    $region18: #{tpu_custom_call.1} parent=1 // pred_check
      %p82 = pneg %p81
    $region19: #{tpu_custom_call.1} parent=1 // pred_check_branch
      %84 = sbr.rel (%p82) target = $region21
    $region20: #{tpu_custom_call.1} parent=1 // pred_region
      %85 = vst [vmem:[#allocation2] sm:$0xff] 0.0
      %86 = vst [vmem:[#allocation2 + $0x8] sm:$0xff] 0.0
      %87 = vst [vmem:[#allocation2 + $0x10] sm:$0xff] 0.0
      %88 = vst [vmem:[#allocation2 + $0x18] sm:$0xff] 0.0
      %89 = vst [vmem:[#allocation3] sm:$0xff] 0.0
      %90 = vst [vmem:[#allocation3 + $0x8] sm:$0xff] 0.0
      %91 = vst [vmem:[#allocation3 + $0x10] sm:$0xff] 0.0
      %92 = vst [vmem:[#allocation3 + $0x18] sm:$0xff] 0.0
    $region21: #{tpu_custom_call.1} parent=1 // pred_fallthru
      _
    %v93 = vld [vmem:[#allocation4] sm:$0xff]
    %v94 = vld [vmem:[#allocation4 + $0x8] sm:$0xff]
    %v95 = vld [vmem:[#allocation4 + $0x10] sm:$0xff]
    %v96 = vld [vmem:[#allocation4 + $0x18] sm:$0xff]
    %v97 = vld [vmem:[#allocation7] sm:$0xff]
    %v98 = vld [vmem:[#allocation7 + $0x8] sm:$0xff]
    %v99 = vld [vmem:[#allocation7 + $0x10] sm:$0xff]
    %v100 = vld [vmem:[#allocation7 + $0x18] sm:$0xff]
    %v101 = vsub.f32 %v93, %v97
    %v102 = vsub.f32 %v94, %v98
    %v103 = vsub.f32 %v95, %v99
    %v104 = vsub.f32 %v96, %v100
    %v105 = vmul.f32 %v101, %v101
    %v106 = vmul.f32 %v102, %v102
    %v107 = vmul.f32 %v103, %v103
    %v108 = vmul.f32 %v104, %v104
    %v109 = vadd.f32 %v97, 1e-08
    %v110 = vadd.f32 %v98, 1e-08
    %v111 = vadd.f32 %v99, 1e-08
    %v112 = vadd.f32 %v100, 1e-08
    %v113 = vrcp.pop %v109
    %v114 = vmul.f32 %v109, %v113
    %v115 = vsub.f32 1.0, %v114
    %v116 = vmul.f32 %v113, %v115
    %v117 = vadd.f32 %v113, %v116
    %vm118 = vweird.f32 %v109
    %vm119 = vweird.f32 %v113
    %vm120 = vmor %vm118, %vm119
    %v121 = vsel %vm120, %v113, %v117
    %v122 = vand.u32 2147483647, %v109
    %vm123 = vcmp.eq.f32.partialorder %v122, 8.507059e+37
    %v124 = vand.u32 %v109, 2147483648
    %v125 = vor.u32 1.1754944e-38, %v124
    %v126 = vsel %vm123, %v125, %v121
    %v127 = vrcp.pop %v110
    %v128 = vmul.f32 %v110, %v127
    %v129 = vsub.f32 1.0, %v128
    %v130 = vmul.f32 %v127, %v129
    %v131 = vadd.f32 %v127, %v130
    %vm132 = vweird.f32 %v110
    %vm133 = vweird.f32 %v127
    %vm134 = vmor %vm132, %vm133
    %v135 = vsel %vm134, %v127, %v131
    %v136 = vand.u32 2147483647, %v110
    %vm137 = vcmp.eq.f32.partialorder %v136, 8.507059e+37
    %v138 = vand.u32 %v110, 2147483648
    %v139 = vor.u32 1.1754944e-38, %v138
    %v140 = vsel %vm137, %v139, %v135
    %v141 = vrcp.pop %v111
    %v142 = vmul.f32 %v111, %v141
    %v143 = vsub.f32 1.0, %v142
    %v144 = vmul.f32 %v141, %v143
    %v145 = vadd.f32 %v141, %v144
    %vm146 = vweird.f32 %v111
    %vm147 = vweird.f32 %v141
    %vm148 = vmor %vm146, %vm147
    %v149 = vsel %vm148, %v141, %v145
    %v150 = vand.u32 2147483647, %v111
    %vm151 = vcmp.eq.f32.partialorder %v150, 8.507059e+37
    %v152 = vand.u32 %v111, 2147483648
    %v153 = vor.u32 1.1754944e-38, %v152
    %v154 = vsel %vm151, %v153, %v149
    %v155 = vrcp.pop %v112
    %v156 = vmul.f32 %v112, %v155
    %v157 = vsub.f32 1.0, %v156
    %v158 = vmul.f32 %v155, %v157
    %v159 = vadd.f32 %v155, %v158
    %vm160 = vweird.f32 %v112
    %vm161 = vweird.f32 %v155
    %vm162 = vmor %vm160, %vm161
    %v163 = vsel %vm162, %v155, %v159
    %v164 = vand.u32 2147483647, %v112
    %vm165 = vcmp.eq.f32.partialorder %v164, 8.507059e+37
    %v166 = vand.u32 %v112, 2147483648
    %v167 = vor.u32 1.1754944e-38, %v166
    %v168 = vsel %vm165, %v167, %v163
    %v169 = vmul.f32 %v101, %v126
    %v170 = vmul.f32 %v102, %v140
    %v171 = vmul.f32 %v103, %v154
    %v172 = vmul.f32 %v104, %v168
    %v173 = vand.u32 2147483647, %v169
    %v174 = vand.u32 2147483647, %v170
    %v175 = vand.u32 2147483647, %v171
    %v176 = vand.u32 2147483647, %v172
    %s177 = sadd.s32 0, 0
    %s178 = smul.u32 %s177, 32
    %s179 = sadd.s32 %s178, 32
    %p180 = scmp.le.s32.totalorder %s179, 16
    // Predicated region
    $region22: #{tpu_custom_call.1} parent=1 // pred_check
      %p181 = pneg %p180
    $region23: #{tpu_custom_call.1} parent=1 // pred_check_branch
      %183 = sbr.rel (%p181) target = $region25
    $region24: #{tpu_custom_call.1} parent=1 // pred_region
      %v184 = vld [vmem:[#allocation2] sm:$0xff]
      %v185 = vld [vmem:[#allocation2 + $0x8] sm:$0xff]
      %v186 = vld [vmem:[#allocation2 + $0x10] sm:$0xff]
      %v187 = vld [vmem:[#allocation2 + $0x18] sm:$0xff]
      %v188 = vadd.f32 %v105, 0.0
      %v189 = vadd.f32 %v106, 0.0
      %v190 = vadd.f32 %v107, 0.0
      %v191 = vadd.f32 %v108, 0.0
      %v192 = vadd.f32 %v184, %v188
      %v193 = vadd.f32 %v185, %v189
      %v194 = vadd.f32 %v186, %v190
      %v195 = vadd.f32 %v187, %v191
      %196 = vst [vmem:[#allocation2] sm:$0xff] %v192
      %197 = vst [vmem:[#allocation2 + $0x8] sm:$0xff] %v193
      %198 = vst [vmem:[#allocation2 + $0x10] sm:$0xff] %v194
      %199 = vst [vmem:[#allocation2 + $0x18] sm:$0xff] %v195
      %v200 = vld [vmem:[#allocation3] sm:$0xff]
      %v201 = vld [vmem:[#allocation3 + $0x8] sm:$0xff]
      %v202 = vld [vmem:[#allocation3 + $0x10] sm:$0xff]
      %v203 = vld [vmem:[#allocation3 + $0x18] sm:$0xff]
      %v204 = vadd.f32 %v173, 0.0
      %v205 = vadd.f32 %v174, 0.0
      %v206 = vadd.f32 %v175, 0.0
      %v207 = vadd.f32 %v176, 0.0
      %v208 = vadd.f32 %v200, %v204
      %v209 = vadd.f32 %v201, %v205
      %v210 = vadd.f32 %v202, %v206
      %v211 = vadd.f32 %v203, %v207
      %212 = vst [vmem:[#allocation3] sm:$0xff] %v208
      %213 = vst [vmem:[#allocation3 + $0x8] sm:$0xff] %v209
      %214 = vst [vmem:[#allocation3 + $0x10] sm:$0xff] %v210
      %215 = vst [vmem:[#allocation3 + $0x18] sm:$0xff] %v211
    $region25: #{tpu_custom_call.1} parent=1 // pred_fallthru
      _
    %p216 = scmp.gt.s32.totalorder %s179, 16
    // Predicated region
    $region26: #{tpu_custom_call.1} parent=1 // pred_check
      %p217 = pneg %p216
    $region27: #{tpu_custom_call.1} parent=1 // pred_check_branch
      %219 = sbr.rel (%p217) target = $region29
    $region28: #{tpu_custom_call.1} parent=1 // pred_region
      %v220 = vlaneseq
      %v221 = vshrl.u32 %v220, 7
      %v222 = vadd.s32 %v221, 8
      %v223 = vadd.s32 %v221, 16
      %v224 = vadd.s32 %v221, 24
      %s225 = ssub.s32 16, %s178
      %v226 = vstv %s225
      %vm227 = vcmp.lt.s32.totalorder %v221, %v226
      %vm228 = vcmp.lt.s32.totalorder %v222, %v226
      %vm229 = vcmp.lt.s32.totalorder %v223, %v226
      %vm230 = vcmp.lt.s32.totalorder %v224, %v226
      %v231 = vsel %vm227, %v105, 0.0
      %v232 = vsel %vm228, %v106, 0.0
      %v233 = vsel %vm229, %v107, 0.0
      %v234 = vsel %vm230, %v108, 0.0
      %v235 = vsel %vm227, %v173, 0.0
      %v236 = vsel %vm228, %v174, 0.0
      %v237 = vsel %vm229, %v175, 0.0
      %v238 = vsel %vm230, %v176, 0.0
      %v239 = vld [vmem:[#allocation2] sm:$0xff]
      %v240 = vld [vmem:[#allocation2 + $0x8] sm:$0xff]
      %v241 = vld [vmem:[#allocation2 + $0x10] sm:$0xff]
      %v242 = vld [vmem:[#allocation2 + $0x18] sm:$0xff]
      %v243 = vadd.f32 %v231, 0.0
      %v244 = vadd.f32 %v232, 0.0
      %v245 = vadd.f32 %v233, 0.0
      %v246 = vadd.f32 %v234, 0.0
      %v247 = vadd.f32 %v239, %v243
      %v248 = vadd.f32 %v240, %v244
      %v249 = vadd.f32 %v241, %v245
      %v250 = vadd.f32 %v242, %v246
      %251 = vst [vmem:[#allocation2] sm:$0xff] %v247
      %252 = vst [vmem:[#allocation2 + $0x8] sm:$0xff] %v248
      %253 = vst [vmem:[#allocation2 + $0x10] sm:$0xff] %v249
      %254 = vst [vmem:[#allocation2 + $0x18] sm:$0xff] %v250
      %v255 = vld [vmem:[#allocation3] sm:$0xff]
      %v256 = vld [vmem:[#allocation3 + $0x8] sm:$0xff]
      %v257 = vld [vmem:[#allocation3 + $0x10] sm:$0xff]
      %v258 = vld [vmem:[#allocation3 + $0x18] sm:$0xff]
      %v259 = vadd.f32 %v235, 0.0
      %v260 = vadd.f32 %v236, 0.0
      %v261 = vadd.f32 %v237, 0.0
      %v262 = vadd.f32 %v238, 0.0
      %v263 = vadd.f32 %v255, %v259
      %v264 = vadd.f32 %v256, %v260
      %v265 = vadd.f32 %v257, %v261
      %v266 = vadd.f32 %v258, %v262
      %267 = vst [vmem:[#allocation3] sm:$0xff] %v263
      %268 = vst [vmem:[#allocation3 + $0x8] sm:$0xff] %v264
      %269 = vst [vmem:[#allocation3 + $0x10] sm:$0xff] %v265
      %270 = vst [vmem:[#allocation3 + $0x18] sm:$0xff] %v266
    $region29: #{tpu_custom_call.1} parent=1 // pred_fallthru
      _
    // Predicated region
    $region30: #{tpu_custom_call.1} parent=1 // pred_check
      %p271 = pneg %p81
    $region31: #{tpu_custom_call.1} parent=1 // pred_check_branch
      %273 = sbr.rel (%p271) target = $region33
    $region32: #{tpu_custom_call.1} parent=1 // pred_region
      %v274 = vld [vmem:[#allocation2] sm:$0xff]
      %v275 = vld [vmem:[#allocation2 + $0x8] sm:$0xff]
      %v276 = vld [vmem:[#allocation2 + $0x10] sm:$0xff]
      %v277 = vld [vmem:[#allocation2 + $0x18] sm:$0xff]
      %278 = vst [vmem:[#allocation9] sm:$0xff] %v274
      %279 = vst [vmem:[#allocation9 + $0x8] sm:$0xff] %v275
      %280 = vst [vmem:[#allocation9 + $0x10] sm:$0xff] %v276
      %281 = vst [vmem:[#allocation9 + $0x18] sm:$0xff] %v277
      %v282 = vld [vmem:[#allocation3] sm:$0xff]
      %v283 = vld [vmem:[#allocation3 + $0x8] sm:$0xff]
      %v284 = vld [vmem:[#allocation3 + $0x10] sm:$0xff]
      %v285 = vld [vmem:[#allocation3 + $0x18] sm:$0xff]
      %286 = vst [vmem:[#allocation10] sm:$0xff] %v282
      %287 = vst [vmem:[#allocation10 + $0x8] sm:$0xff] %v283
      %288 = vst [vmem:[#allocation10 + $0x10] sm:$0xff] %v284
      %289 = vst [vmem:[#allocation10 + $0x18] sm:$0xff] %v285
    $region33: #{tpu_custom_call.1} parent=1 // pred_fallthru
      _
    // Predicated region
    $region34: #{tpu_custom_call.1} parent=1 // pred_check
      _
    $region35: #{tpu_custom_call.1} parent=1 // pred_check_branch
      %291 = sbr.rel (0) target = $region37
    $region36: #{tpu_custom_call.1} parent=1 // pred_region
      %293 = vsyncadd [#allocation6], 0
      %s294 = sshll.u32 [#allocation9], 4
      %s295 = int_to_ptr.vmem [resolvable:$true] %s294
      %s296 = sshll.u32 %s2, 4
      %s297 = int_to_ptr.hbm [resolvable:$true] %s296
      %302 = dma.vmem_to_hbm [thread:$0]  %s295, 512, %s297, [#allocation6], 128, 128, 8
    $region37: #{tpu_custom_call.1} parent=1 // pred_fallthru
      _
    // Predicated region
    $region38: #{tpu_custom_call.1} parent=1 // pred_check
      _
    $region39: #{tpu_custom_call.1} parent=1 // pred_check_branch
      %304 = sbr.rel (0) target = $region41
    $region40: #{tpu_custom_call.1} parent=1 // pred_region
      %306 = vsyncadd [#allocation11], 0
      %s307 = sshll.u32 [#allocation10], 4
      %s308 = int_to_ptr.vmem [resolvable:$true] %s307
      %s309 = sshll.u32 %s3, 4
      %s310 = int_to_ptr.hbm [resolvable:$true] %s309
      %315 = dma.vmem_to_hbm [thread:$0]  %s308, 512, %s310, [#allocation11], 128, 128, 8
    $region41: #{tpu_custom_call.1} parent=1 // pred_fallthru
      _
    // Predicated region
    $region42: #{tpu_custom_call.1} parent=1 // pred_check
      _
    $region43: #{tpu_custom_call.1} parent=1 // pred_check_branch
      %317 = sbr.rel (0) target = $region45
    $region44: #{tpu_custom_call.1} parent=1 // pred_region
      %319 = dma.done [#allocation6], 512
    $region45: #{tpu_custom_call.1} parent=1 // pred_fallthru
      _
    // Predicated region
    $region46: #{tpu_custom_call.1} parent=1 // pred_check
      _
    $region47: #{tpu_custom_call.1} parent=1 // pred_check_branch
      %321 = sbr.rel (0) target = $region49
    $region48: #{tpu_custom_call.1} parent=1 // pred_region
      %323 = dma.done [#allocation11], 512
    $region49: #{tpu_custom_call.1} parent=1 // pred_fallthru
      _
    %324 = vsyncpa [#allocation5], 1
    %325 = vsyncpa [#allocation8], 1
    %326 = vsyncpa [#allocation6], 1
    %327 = vsyncpa [#allocation11], 1

</llo_original>
